<compile_context>
chip_gen: v6e
topology: v6e:2x2x1
jax: 0.10.0
libtpu: 0.0.40
codegen_flags: <defaults>
</compile_context>

<pallas_src>
import jax
import jax.numpy as jnp
from jax.experimental import pallas as pl
from jax.experimental.pallas import tpu as pltpu


def _encoder_ptile_kernel(logw_ref, logp_ref, gprob_ref, gparam_ref,
                          nsrc_ref, gp_ref, gb_ref, sb_ref, gpar_ref):
    k, tn = logp_ref.shape              # (max_detections + 1, tile_n)
    max_det = gprob_ref.shape[0]

    # ---- 1. sequential-MAP n_sources:
    #      argmax_j softmax(logp)[j] * w[j] == argmax_j (logp[j] + log w[j])
    #      Single (k, tn) load, then unrolled over the k sublane rows with
    #      VPU compares/selects (strict > keeps the first max = torch/jnp
    #      argmax tie-break).
    scores = logp_ref[...] + logw_ref[...]                  # (k, tn); (k,1) lane-bcast
    best = scores[0:1, :]                                   # (1, tn)
    n_src = jnp.zeros((1, tn), jnp.int32)
    for j in range(1, k):                                   # k is static (tiny)
        v = scores[j:j + 1, :]
        better = v > best
        best = jnp.where(better, v, best)
        n_src = jnp.where(better, jnp.int32(j), n_src)
    nsrc_ref[...] = n_src                                    # lane-dense (1, tn) int32

    # ---- 2. is_on_array = get_is_on_from_n_sources(n_sources, max_det)
    det_idx = jax.lax.broadcasted_iota(jnp.int32, (max_det, tn), 0)
    is_on = (det_idx < n_src).astype(jnp.float32)            # (max_det, tn)

    # ---- 3./4. galaxy / star bools (same op order as the torch code)
    gp = gprob_ref[...] * is_on                               # galaxy_probs *= is_on
    gb = (gp > 0.5).astype(jnp.float32) * is_on               # galaxy_bools
    gp_ref[...] = gp
    gb_ref[...] = gb
    sb_ref[...] = is_on - gb           # == (1 - gb) * is_on   since gb <= is_on

    # ---- 5. galaxy_params *= is_on * galaxy_bools  (== gb)
    gpar_ref[...] = gparam_ref[...] * gb[:, None, :]


def encode_ptiles(n_source_log_probs, map_n_source_weights,
                  galaxy_probs_raw, galaxy_params_raw, *, tile_n=None):
    n, k = n_source_log_probs.shape
    max_det = galaxy_probs_raw.shape[1]
    g = galaxy_params_raw.shape[2]

    # --- tile size: lane-dense (multiple of 128), large to amortize the
    #     ~0.35us per-grid-step overhead, >=2 steps when possible (megacore).
    if tile_n is None:
        tile_n = min(4096, max(128, pl.cdiv(n, 2)))
    tile_n = ((tile_n + 127) // 128) * 128
    n_pad = pl.cdiv(n, tile_n) * tile_n
    grid = (n_pad // tile_n,)

    # --- ptile-last layout: N_ptiles on the 128-lane axis (layout plumbing).
    logp_t = jnp.transpose(n_source_log_probs.astype(jnp.float32))          # (k, n)
    gprob_t = jnp.transpose(galaxy_probs_raw.astype(jnp.float32))           # (max_det, n)
    gparam_t = jnp.transpose(galaxy_params_raw.astype(jnp.float32),
                             (1, 2, 0))                                     # (max_det, g, n)
    if n_pad != n:
        pad = n_pad - n
        logp_t = jnp.pad(logp_t, ((0, 0), (0, pad)))
        gprob_t = jnp.pad(gprob_t, ((0, 0), (0, pad)))
        gparam_t = jnp.pad(gparam_t, ((0, 0), (0, 0), (0, pad)))

    # log-domain weights (argmax(exp(logp)*w) == argmax(logp + log w));
    # tiny (k,1) broadcast-source block, no exp in the kernel.
    logw = jnp.log(map_n_source_weights.astype(jnp.float32)).reshape(k, 1)

    out_shapes = (
        jax.ShapeDtypeStruct((1, n_pad), jnp.int32),              # n_sources
        jax.ShapeDtypeStruct((max_det, n_pad), jnp.float32),      # galaxy_probs
        jax.ShapeDtypeStruct((max_det, n_pad), jnp.float32),      # galaxy_bools
        jax.ShapeDtypeStruct((max_det, n_pad), jnp.float32),      # star_bools
        jax.ShapeDtypeStruct((max_det, g, n_pad), jnp.float32),   # galaxy_params
    )

    grid_spec = pltpu.PrefetchScalarGridSpec(
        num_scalar_prefetch=0,
        grid=grid,
        in_specs=[
            pl.BlockSpec((k, 1), lambda i: (0, 0)),               # log weights
            pl.BlockSpec((k, tile_n), lambda i: (0, i)),          # logp^T
            pl.BlockSpec((max_det, tile_n), lambda i: (0, i)),    # gprob^T
            pl.BlockSpec((max_det, g, tile_n), lambda i: (0, 0, i)),
        ],
        out_specs=[
            pl.BlockSpec((1, tile_n), lambda i: (0, i)),
            pl.BlockSpec((max_det, tile_n), lambda i: (0, i)),
            pl.BlockSpec((max_det, tile_n), lambda i: (0, i)),
            pl.BlockSpec((max_det, tile_n), lambda i: (0, i)),
            pl.BlockSpec((max_det, g, tile_n), lambda i: (0, 0, i)),
        ],
    )

    nsrc, gp, gb, sb, gpar = pl.pallas_call(
        _encoder_ptile_kernel,
        out_shape=out_shapes,
        grid_spec=grid_spec,
        compiler_params=pltpu.CompilerParams(
            dimension_semantics=("parallel",)),
    )(logw, logp_t, gprob_t, gparam_t)

    # Present results with PyTorch-equivalent shapes.
    return {
        "n_sources": nsrc[0, :n],
        "galaxy_probs": jnp.transpose(gp[:, :n]).reshape(n, max_det, 1),
        "galaxy_bools": jnp.transpose(gb[:, :n]).reshape(n, max_det, 1),
        "star_bools": jnp.transpose(sb[:, :n]).reshape(n, max_det, 1),
        "galaxy_params": jnp.transpose(gpar[:, :, :n], (2, 0, 1)),
    }


def _reference(logp, w, gprob, gparam):
    """Pure-JAX mirror of Encoder._encode_ptiles / get_star_bools.

    argmax is taken in log-domain; mathematically identical to
    argmax(softmax(logp) * w) used by the torch code.
    """
    n, k = logp.shape
    max_det = gprob.shape[1]
    scores = logp + jnp.log(w)[None, :]
    n_src = jnp.argmax(scores, axis=-1).astype(jnp.int32)
    is_on = (jnp.arange(max_det)[None, :] < n_src[:, None]).astype(jnp.float32)
    gp = gprob * is_on
    gb = (gp > 0.5).astype(jnp.float32) * is_on
    sb = (1.0 - gb) * is_on
    gpar = gparam * (is_on * gb)[:, :, None]
    return n_src, gp, gb, sb, gpar


if __name__ == "__main__":
    key = jax.random.PRNGKey(0)
    N_PTILES, MAX_DET, G = 512, 4, 8
    K = MAX_DET + 1

    k1, k2, k3 = jax.random.split(key, 3)
    n_source_log_probs = jax.nn.log_softmax(
        jax.random.normal(k1, (N_PTILES, K), dtype=jnp.float32), axis=-1)
    galaxy_probs_raw = jax.nn.sigmoid(
        jax.random.normal(k2, (N_PTILES, MAX_DET), dtype=jnp.float32))
    galaxy_params_raw = jax.random.normal(
        k3, (N_PTILES, MAX_DET, G), dtype=jnp.float32)

    # Encoder.__init__ default is ones(max_detections+1); use non-uniform
    # weights here to exercise the weighting path as well.
    map_n_source_weights = jnp.array([1.0, 0.7, 1.3, 0.9, 1.1], jnp.float32)

    out = encode_ptiles(n_source_log_probs, map_n_source_weights,
                        galaxy_probs_raw, galaxy_params_raw)
    jax.block_until_ready(out)

    # correctness check against the pure-JAX reference
    r_nsrc, r_gp, r_gb, r_sb, r_gpar = _reference(
        n_source_log_probs, map_n_source_weights,
        galaxy_probs_raw, galaxy_params_raw)
    assert jnp.all(out["n_sources"] == r_nsrc)
    assert jnp.allclose(out["galaxy_probs"][..., 0], r_gp, atol=1e-6)
    assert jnp.allclose(out["galaxy_bools"][..., 0], r_gb)
    assert jnp.allclose(out["star_bools"][..., 0], r_sb)
    assert jnp.allclose(out["galaxy_params"], r_gpar, atol=1e-6)

    print("KERNEL_OK")
</pallas_src>

<mosaic_0001>
module attributes {stable_mosaic.version = 11 : i64} {
  func.func @_encoder_ptile_kernel(%arg0: i32, %arg1: memref<5x1xf32, #tpu.memory_space<vmem>>, %arg2: memref<5x256xf32, #tpu.memory_space<vmem>>, %arg3: memref<4x256xf32, #tpu.memory_space<vmem>>, %arg4: memref<4x8x256xf32, #tpu.memory_space<vmem>>, %arg5: memref<1x256xi32, #tpu.memory_space<vmem>>, %arg6: memref<4x256xf32, #tpu.memory_space<vmem>>, %arg7: memref<4x256xf32, #tpu.memory_space<vmem>>, %arg8: memref<4x256xf32, #tpu.memory_space<vmem>>, %arg9: memref<4x8x256xf32, #tpu.memory_space<vmem>>) attributes {dimension_semantics = [#tpu.dimension_semantics<parallel>], iteration_bounds = array<i64: 2>, scalar_prefetch = 0 : i64, scratch_operands = 0 : i64, tpu.core_type = #tpu.core_type<tc>, window_params = [{pipeline_mode = #tpu.pipeline_mode<synchronous>, transform_indices = @transform_0, window_bounds = array<i64: 5, 1>}, {transform_indices = @transform_1, window_bounds = array<i64: 5, 256>}, {transform_indices = @transform_2, window_bounds = array<i64: 4, 256>}, {transform_indices = @transform_3, window_bounds = array<i64: 4, 8, 256>}, {transform_indices = @transform_4, window_bounds = array<i64: 1, 256>}, {transform_indices = @transform_5, window_bounds = array<i64: 4, 256>}, {transform_indices = @transform_6, window_bounds = array<i64: 4, 256>}, {transform_indices = @transform_7, window_bounds = array<i64: 4, 256>}, {transform_indices = @transform_8, window_bounds = array<i64: 4, 8, 256>}]} {
    %c0 = arith.constant 0 : index
    %c0_0 = arith.constant 0 : index
    %0 = vector.load %arg2[%c0, %c0_0] : memref<5x256xf32, #tpu.memory_space<vmem>>, vector<5x256xf32>
    %c0_1 = arith.constant 0 : index
    %c0_2 = arith.constant 0 : index
    %1 = vector.load %arg1[%c0_1, %c0_2] : memref<5x1xf32, #tpu.memory_space<vmem>>, vector<5x1xf32>
    %2 = vector.broadcast %1 : vector<5x1xf32> to vector<5x256xf32>
    %3 = arith.addf %0, %2 : vector<5x256xf32>
    %4 = vector.extract_strided_slice %3 {offsets = [0, 0], sizes = [1, 256], strides = [1, 1]} : vector<5x256xf32> to vector<1x256xf32>
    %c0_i32 = arith.constant 0 : i32
    %5 = vector.broadcast %c0_i32 : i32 to vector<1x256xi32>
    %6 = vector.extract_strided_slice %3 {offsets = [1, 0], sizes = [1, 256], strides = [1, 1]} : vector<5x256xf32> to vector<1x256xf32>
    %7 = arith.cmpf ogt, %6, %4 : vector<1x256xf32>
    %8 = arith.select %7, %6, %4 : vector<1x256xi1>, vector<1x256xf32>
    %c1_i32 = arith.constant 1 : i32
    %9 = vector.broadcast %c1_i32 : i32 to vector<1x256xi32>
    %10 = arith.select %7, %9, %5 : vector<1x256xi1>, vector<1x256xi32>
    %11 = vector.extract_strided_slice %3 {offsets = [2, 0], sizes = [1, 256], strides = [1, 1]} : vector<5x256xf32> to vector<1x256xf32>
    %12 = arith.cmpf ogt, %11, %8 : vector<1x256xf32>
    %13 = arith.select %12, %11, %8 : vector<1x256xi1>, vector<1x256xf32>
    %c2_i32 = arith.constant 2 : i32
    %14 = vector.broadcast %c2_i32 : i32 to vector<1x256xi32>
    %15 = arith.select %12, %14, %10 : vector<1x256xi1>, vector<1x256xi32>
    %16 = vector.extract_strided_slice %3 {offsets = [3, 0], sizes = [1, 256], strides = [1, 1]} : vector<5x256xf32> to vector<1x256xf32>
    %17 = arith.cmpf ogt, %16, %13 : vector<1x256xf32>
    %18 = arith.select %17, %16, %13 : vector<1x256xi1>, vector<1x256xf32>
    %c3_i32 = arith.constant 3 : i32
    %19 = vector.broadcast %c3_i32 : i32 to vector<1x256xi32>
    %20 = arith.select %17, %19, %15 : vector<1x256xi1>, vector<1x256xi32>
    %21 = vector.extract_strided_slice %3 {offsets = [4, 0], sizes = [1, 256], strides = [1, 1]} : vector<5x256xf32> to vector<1x256xf32>
    %22 = arith.cmpf ogt, %21, %18 : vector<1x256xf32>
    %c4_i32 = arith.constant 4 : i32
    %23 = vector.broadcast %c4_i32 : i32 to vector<1x256xi32>
    %24 = arith.select %22, %23, %20 : vector<1x256xi1>, vector<1x256xi32>
    %c0_3 = arith.constant 0 : index
    %c0_4 = arith.constant 0 : index
    %25 = vector.load %arg5[%c0_3, %c0_4] : memref<1x256xi32, #tpu.memory_space<vmem>>, vector<1x256xi32>
    tpu.vector_store %arg5[%c0_3, %c0_4], %24 {strides = array<i32>} : memref<1x256xi32, #tpu.memory_space<vmem>>, vector<1x256xi32>,
    %26 = tpu.iota {dimensions = array<i32: 0>} : vector<4x256xi32>
    %27 = vector.broadcast %24 : vector<1x256xi32> to vector<4x256xi32>
    %28 = arith.cmpi slt, %26, %27 : vector<4x256xi32>
    %29 = arith.extui %28 : vector<4x256xi1> to vector<4x256xi32>
    %30 = arith.sitofp %29 : vector<4x256xi32> to vector<4x256xf32>
    %c0_5 = arith.constant 0 : index
    %c0_6 = arith.constant 0 : index
    %31 = vector.load %arg3[%c0_5, %c0_6] : memref<4x256xf32, #tpu.memory_space<vmem>>, vector<4x256xf32>
    %32 = arith.mulf %31, %30 : vector<4x256xf32>
    %cst = arith.constant 5.000000e-01 : f32
    %33 = vector.broadcast %cst : f32 to vector<4x256xf32>
    %34 = arith.cmpf ogt, %32, %33 : vector<4x256xf32>
    %35 = arith.extui %34 : vector<4x256xi1> to vector<4x256xi32>
    %36 = arith.sitofp %35 : vector<4x256xi32> to vector<4x256xf32>
    %37 = arith.mulf %36, %30 : vector<4x256xf32>
    %c0_7 = arith.constant 0 : index
    %c0_8 = arith.constant 0 : index
    %38 = vector.load %arg6[%c0_7, %c0_8] : memref<4x256xf32, #tpu.memory_space<vmem>>, vector<4x256xf32>
    tpu.vector_store %arg6[%c0_7, %c0_8], %32 {strides = array<i32>} : memref<4x256xf32, #tpu.memory_space<vmem>>, vector<4x256xf32>,
    %c0_9 = arith.constant 0 : index
    %c0_10 = arith.constant 0 : index
    %39 = vector.load %arg7[%c0_9, %c0_10] : memref<4x256xf32, #tpu.memory_space<vmem>>, vector<4x256xf32>
    tpu.vector_store %arg7[%c0_9, %c0_10], %37 {strides = array<i32>} : memref<4x256xf32, #tpu.memory_space<vmem>>, vector<4x256xf32>,
    %40 = arith.subf %30, %37 : vector<4x256xf32>
    %c0_11 = arith.constant 0 : index
    %c0_12 = arith.constant 0 : index
    %41 = vector.load %arg8[%c0_11, %c0_12] : memref<4x256xf32, #tpu.memory_space<vmem>>, vector<4x256xf32>
    tpu.vector_store %arg8[%c0_11, %c0_12], %40 {strides = array<i32>} : memref<4x256xf32, #tpu.memory_space<vmem>>, vector<4x256xf32>,
    %c0_13 = arith.constant 0 : index
    %c0_14 = arith.constant 0 : index
    %c0_15 = arith.constant 0 : index
    %42 = vector.load %arg4[%c0_13, %c0_14, %c0_15] : memref<4x8x256xf32, #tpu.memory_space<vmem>>, vector<4x8x256xf32>
    %43 = vector.shape_cast %37 : vector<4x256xf32> to vector<4x1x256xf32>
    %44 = vector.broadcast %43 : vector<4x1x256xf32> to vector<4x8x256xf32>
    %45 = arith.mulf %42, %44 : vector<4x8x256xf32>
    %c0_16 = arith.constant 0 : index
    %c0_17 = arith.constant 0 : index
    %c0_18 = arith.constant 0 : index
    %46 = vector.load %arg9[%c0_16, %c0_17, %c0_18] : memref<4x8x256xf32, #tpu.memory_space<vmem>>, vector<4x8x256xf32>
    tpu.vector_store %arg9[%c0_16, %c0_17, %c0_18], %45 {strides = array<i32>} : memref<4x8x256xf32, #tpu.memory_space<vmem>>, vector<4x8x256xf32>,
    return
  }
  func.func @transform_0(%arg0: i32) -> (i32, i32) {
    %c0_i32 = arith.constant 0 : i32
    %c0_i32_0 = arith.constant 0 : i32
    %c0_i32_1 = arith.constant 0 : i32
    return %c0_i32, %c0_i32_0 : i32, i32
  }
  func.func @transform_1(%arg0: i32) -> (i32, i32) {
    %c0_i32 = arith.constant 0 : i32
    %c0_i32_0 = arith.constant 0 : i32
    return %c0_i32, %arg0 : i32, i32
  }
  func.func @transform_2(%arg0: i32) -> (i32, i32) {
    %c0_i32 = arith.constant 0 : i32
    %c0_i32_0 = arith.constant 0 : i32
    return %c0_i32, %arg0 : i32, i32
  }
  func.func @transform_3(%arg0: i32) -> (i32, i32, i32) {
    %c0_i32 = arith.constant 0 : i32
    %c0_i32_0 = arith.constant 0 : i32
    %c0_i32_1 = arith.constant 0 : i32
    return %c0_i32, %c0_i32_0, %arg0 : i32, i32, i32
  }
  func.func @transform_4(%arg0: i32) -> (i32, i32) {
    %c0_i32 = arith.constant 0 : i32
    %c0_i32_0 = arith.constant 0 : i32
    return %c0_i32, %arg0 : i32, i32
  }
  func.func @transform_5(%arg0: i32) -> (i32, i32) {
    %c0_i32 = arith.constant 0 : i32
    %c0_i32_0 = arith.constant 0 : i32
    return %c0_i32, %arg0 : i32, i32
  }
  func.func @transform_6(%arg0: i32) -> (i32, i32) {
    %c0_i32 = arith.constant 0 : i32
    %c0_i32_0 = arith.constant 0 : i32
    return %c0_i32, %arg0 : i32, i32
  }
  func.func @transform_7(%arg0: i32) -> (i32, i32) {
    %c0_i32 = arith.constant 0 : i32
    %c0_i32_0 = arith.constant 0 : i32
    return %c0_i32, %arg0 : i32, i32
  }
  func.func @transform_8(%arg0: i32) -> (i32, i32, i32) {
    %c0_i32 = arith.constant 0 : i32
    %c0_i32_0 = arith.constant 0 : i32
    %c0_i32_1 = arith.constant 0 : i32
    return %c0_i32, %c0_i32_0, %arg0 : i32, i32, i32
  }
}

</mosaic_0001>

<llo_original>
// kernel: tpu_custom_call.1
$region0: #{tpu_custom_call.1}
  #allocation0 [shape = 'u32[]', space=smem, size = 0x4, offset = 0x4, fixed_abs, tag = 'smem constant byte address 0x4 - core index']
  #allocation1 [shape = 'u32[144,128]{1,0:T(1,128)}', space=vmem, size = 0x12000, scoped, tag = 'internal scratch']
  %s0 = inlined_call_operand.vmem [shape: f32[5,1], index: 0, kind: input, shape index: {}]
  %s1 = inlined_call_operand.hbm [shape: f32[5,512], index: 1, kind: input, shape index: {}]
  %s2 = inlined_call_operand.hbm [shape: f32[4,512], index: 2, kind: input, shape index: {}]
  %s3 = inlined_call_operand.hbm [shape: f32[4,8,512], index: 3, kind: input, shape index: {}]
  %s4 = inlined_call_operand.hbm [shape: s32[1,512], index: 4, kind: output, shape index: {0}]
  %s5 = inlined_call_operand.hbm [shape: f32[4,512], index: 5, kind: output, shape index: {1}]
  %s6 = inlined_call_operand.hbm [shape: f32[4,512], index: 6, kind: output, shape index: {2}]
  %s7 = inlined_call_operand.hbm [shape: f32[4,512], index: 7, kind: output, shape index: {3}]
  %s8 = inlined_call_operand.hbm [shape: f32[4,8,512], index: 8, kind: output, shape index: {4}]
  %9 = xla_tuple %s4, %s5, %s6, %s7, %s8
  %s10 = sld [smem:[#allocation0]]
  $region93: #{tpu_custom_call.1} parent=0
    _
  %s12 = ssub.s32 1, %s10
  %s13 = scalar_select 0, %s12, %s10
  $region1: #{tpu_custom_call.1} parent=0
    #allocation2 [shape = 'u8[16384]{0}', space=vmem, size = 0x4000, scoped, tag = 'input window, operand 1']
    #allocation3 [shape = 's32[2]{0}', space=sflag, size = 0x8, scoped, tag = 'scoped memory for tpu_custom_call.1']
    #allocation4 [shape = 's32[2]{0}', space=sflag, size = 0x8, scoped, tag = 'scoped memory for tpu_custom_call.1']
    #allocation5 [shape = 'u8[8192]{0}', space=vmem, size = 0x2000, scoped, tag = 'input window, operand 2']
    #allocation6 [shape = 's32[2]{0}', space=sflag, size = 0x8, scoped, tag = 'scoped memory for tpu_custom_call.1']
    #allocation7 [shape = 'u8[65536]{0}', space=vmem, size = 0x10000, scoped, tag = 'input window, operand 3']
    #allocation8 [shape = 'u8[2048]{0}', space=vmem, size = 0x800, scoped, tag = 'output window, operand 0']
    #allocation9 [shape = 'u8[8192]{0}', space=vmem, size = 0x2000, scoped, tag = 'output window, operand 1']
    #allocation10 [shape = 's32[2]{0}', space=sflag, size = 0x8, scoped, tag = 'scoped memory for tpu_custom_call.1']
    #allocation11 [shape = 'u8[8192]{0}', space=vmem, size = 0x2000, scoped, tag = 'output window, operand 2']
    #allocation12 [shape = 'u8[8192]{0}', space=vmem, size = 0x2000, scoped, tag = 'output window, operand 3']
    #allocation13 [shape = 's32[2]{0}', space=sflag, size = 0x8, scoped, tag = 'scoped memory for tpu_custom_call.1']
    #allocation14 [shape = 'u8[65536]{0}', space=vmem, size = 0x10000, scoped, tag = 'output window, operand 4']
    %14 = vsyncpa [#allocation3], 0
    %s15 = scalar_lea.sflag [#allocation3], 1
    %16 = vsyncpa %s15, 0
    %17 = vsyncpa [#allocation6], 0
    %s18 = scalar_lea.sflag [#allocation6], 1
    %19 = vsyncpa %s18, 0
    %20 = vsyncpa [#allocation4], 0
    %s21 = scalar_lea.sflag [#allocation4], 1
    %22 = vsyncpa %s21, 0
    %23 = vsyncpa [#allocation10], 0
    %s24 = scalar_lea.sflag [#allocation10], 1
    %25 = vsyncpa %s24, 0
    %26 = vsyncpa [#allocation13], 0
    %s27 = scalar_lea.sflag [#allocation13], 1
    %28 = vsyncpa %s27, 0
    loop: start=0, step=1, limit=4
    $region2: #{tpu_custom_call.1} parent=1 // loop_pre_header
      _
    $region3: #{tpu_custom_call.1} parent=1 // loop_header
      %s30 = sphi 0, %s34
      %p31 = scmp.ge.s32.totalorder %s30, 4
      %s38 = sphi 0, %s38
      %s40 = sphi 0, %s38
      %s41 = sphi 0, %s40
      %s55 = sphi 0, %s41
      %s61 = sphi 0, %s63
      %s64 = sphi 0, %s61
      %s65 = sphi 0, %s64
      %s81 = sphi 0, %s65
      %s87 = sphi 0, %s89
      %s90 = sphi 0, %s87
      %s91 = sphi 0, %s90
      %s107 = sphi 0, %s91
      %s113 = sphi 0, %s115
      %s116 = sphi 0, %s113
      %s117 = sphi 0, %s116
      %s133 = sphi 0, %s117
      %s139 = sphi 0, %s141
      %s142 = sphi 0, %s139
      %s143 = sphi 0, %s142
      %s159 = sphi 0, %s143
      %s165 = sphi 0, %s167
      %s168 = sphi 0, %s165
      %s169 = sphi 0, %s168
      %s185 = sphi 0, %s169
      %s191 = sphi 0, %s193
      %s194 = sphi 0, %s191
      %s195 = sphi 0, %s194
      %s211 = sphi 0, %s195
      %s217 = sphi 0, %s219
      %s220 = sphi 0, %s217
      %s221 = sphi 0, %s220
      %s237 = sphi 0, %s221
      %s243 = sphi 0, %s245
      %s246 = sphi 0, %s243
      %s247 = sphi 0, %s246
      %s263 = sphi 0, %s247
    $region4: #{tpu_custom_call.1} parent=1 // loop_header_branch
      %33 = sbr.rel (%p31) target = $region8
    $region5: #{tpu_custom_call.1} parent=1 // loop_body
      %s35 = ssub.s32 %s30, 1
      %s36 = ssub.s32 %s30, 2
      %s37 = sadd.s32 %s30, 1
      %s39 = sadd.s32 %s38, 1
      %p42 = scmp.eq.s32.totalorder %s30, 1
      %p43 = scmp.ne.s32.totalorder %s38, %s40
      %p44 = scmp.eq.s32.totalorder %s30, 0
      %p45 = por %p43, %p44
      %p46 = scmp.ne.s32.totalorder %s38, %s40
      %p47 = scmp.eq.s32.totalorder %s35, 1
      %p48 = por %p46, %p47
      %p49 = scmp.ne.s32.totalorder %s40, %s41
      %p50 = scmp.eq.s32.totalorder %s35, 0
      %p51 = por %p49, %p50
      %p52 = scmp.ne.s32.totalorder %s40, %s41
      %p53 = scmp.eq.s32.totalorder %s36, 1
      %p54 = por %p52, %p53
      %p56 = scmp.ne.s32.totalorder %s41, %s55
      %p57 = scmp.eq.s32.totalorder %s36, 0
      %p58 = por %p56, %p57
      %s59 = ssub.s32 %s30, %s37
      %p60 = scmp.eq.s32.totalorder %s59, 0
      %s62 = sadd.s32 %s61, 1
      %s63 = scalar_select %p60, %s61, %s62
      %p66 = pneg %p60
      %p67 = scmp.eq.s32.totalorder %s30, 1
      %p68 = por %p66, %p67
      %p69 = scmp.ne.s32.totalorder %s61, %s64
      %p70 = scmp.eq.s32.totalorder %s30, 0
      %p71 = por %p69, %p70
      %p72 = scmp.ne.s32.totalorder %s61, %s64
      %p73 = scmp.eq.s32.totalorder %s35, 1
      %p74 = por %p72, %p73
      %p75 = scmp.ne.s32.totalorder %s64, %s65
      %p76 = scmp.eq.s32.totalorder %s35, 0
      %p77 = por %p75, %p76
      %p78 = scmp.ne.s32.totalorder %s64, %s65
      %p79 = scmp.eq.s32.totalorder %s36, 1
      %p80 = por %p78, %p79
      %p82 = scmp.ne.s32.totalorder %s65, %s81
      %p83 = scmp.eq.s32.totalorder %s36, 0
      %p84 = por %p82, %p83
      %s85 = ssub.s32 %s30, %s37
      %p86 = scmp.eq.s32.totalorder %s85, 0
      %s88 = sadd.s32 %s87, 1
      %s89 = scalar_select %p86, %s87, %s88
      %p92 = pneg %p86
      %p93 = scmp.eq.s32.totalorder %s30, 1
      %p94 = por %p92, %p93
      %p95 = scmp.ne.s32.totalorder %s87, %s90
      %p96 = scmp.eq.s32.totalorder %s30, 0
      %p97 = por %p95, %p96
      %p98 = scmp.ne.s32.totalorder %s87, %s90
      %p99 = scmp.eq.s32.totalorder %s35, 1
      %p100 = por %p98, %p99
      %p101 = scmp.ne.s32.totalorder %s90, %s91
      %p102 = scmp.eq.s32.totalorder %s35, 0
      %p103 = por %p101, %p102
      %p104 = scmp.ne.s32.totalorder %s90, %s91
      %p105 = scmp.eq.s32.totalorder %s36, 1
      %p106 = por %p104, %p105
      %p108 = scmp.ne.s32.totalorder %s91, %s107
      %p109 = scmp.eq.s32.totalorder %s36, 0
      %p110 = por %p108, %p109
      %s111 = ssub.s32 %s30, %s37
      %p112 = scmp.eq.s32.totalorder %s111, 0
      %s114 = sadd.s32 %s113, 1
      %s115 = scalar_select %p112, %s113, %s114
      %p118 = pneg %p112
      %p119 = scmp.eq.s32.totalorder %s30, 1
      %p120 = por %p118, %p119
      %p121 = scmp.ne.s32.totalorder %s113, %s116
      %p122 = scmp.eq.s32.totalorder %s30, 0
      %p123 = por %p121, %p122
      %p124 = scmp.ne.s32.totalorder %s113, %s116
      %p125 = scmp.eq.s32.totalorder %s35, 1
      %p126 = por %p124, %p125
      %p127 = scmp.ne.s32.totalorder %s116, %s117
      %p128 = scmp.eq.s32.totalorder %s35, 0
      %p129 = por %p127, %p128
      %p130 = scmp.ne.s32.totalorder %s116, %s117
      %p131 = scmp.eq.s32.totalorder %s36, 1
      %p132 = por %p130, %p131
      %p134 = scmp.ne.s32.totalorder %s117, %s133
      %p135 = scmp.eq.s32.totalorder %s36, 0
      %p136 = por %p134, %p135
      %s137 = ssub.s32 %s30, %s37
      %p138 = scmp.eq.s32.totalorder %s137, 0
      %s140 = sadd.s32 %s139, 1
      %s141 = scalar_select %p138, %s139, %s140
      %p144 = pneg %p138
      %p145 = scmp.eq.s32.totalorder %s30, 1
      %p146 = por %p144, %p145
      %p147 = scmp.ne.s32.totalorder %s139, %s142
      %p148 = scmp.eq.s32.totalorder %s30, 0
      %p149 = por %p147, %p148
      %p150 = scmp.ne.s32.totalorder %s139, %s142
      %p151 = scmp.eq.s32.totalorder %s35, 1
      %p152 = por %p150, %p151
      %p153 = scmp.ne.s32.totalorder %s142, %s143
      %p154 = scmp.eq.s32.totalorder %s35, 0
      %p155 = por %p153, %p154
      %p156 = scmp.ne.s32.totalorder %s142, %s143
      %p157 = scmp.eq.s32.totalorder %s36, 1
      %p158 = por %p156, %p157
      %p160 = scmp.ne.s32.totalorder %s143, %s159
      %p161 = scmp.eq.s32.totalorder %s36, 0
      %p162 = por %p160, %p161
      %s163 = ssub.s32 %s30, %s37
      %p164 = scmp.eq.s32.totalorder %s163, 0
      %s166 = sadd.s32 %s165, 1
      %s167 = scalar_select %p164, %s165, %s166
      %p170 = pneg %p164
      %p171 = scmp.eq.s32.totalorder %s30, 1
      %p172 = por %p170, %p171
      %p173 = scmp.ne.s32.totalorder %s165, %s168
      %p174 = scmp.eq.s32.totalorder %s30, 0
      %p175 = por %p173, %p174
      %p176 = scmp.ne.s32.totalorder %s165, %s168
      %p177 = scmp.eq.s32.totalorder %s35, 1
      %p178 = por %p176, %p177
      %p179 = scmp.ne.s32.totalorder %s168, %s169
      %p180 = scmp.eq.s32.totalorder %s35, 0
      %p181 = por %p179, %p180
      %p182 = scmp.ne.s32.totalorder %s168, %s169
      %p183 = scmp.eq.s32.totalorder %s36, 1
      %p184 = por %p182, %p183
      %p186 = scmp.ne.s32.totalorder %s169, %s185
      %p187 = scmp.eq.s32.totalorder %s36, 0
      %p188 = por %p186, %p187
      %s189 = ssub.s32 %s30, %s37
      %p190 = scmp.eq.s32.totalorder %s189, 0
      %s192 = sadd.s32 %s191, 1
      %s193 = scalar_select %p190, %s191, %s192
      %p196 = pneg %p190
      %p197 = scmp.eq.s32.totalorder %s30, 1
      %p198 = por %p196, %p197
      %p199 = scmp.ne.s32.totalorder %s191, %s194
      %p200 = scmp.eq.s32.totalorder %s30, 0
      %p201 = por %p199, %p200
      %p202 = scmp.ne.s32.totalorder %s191, %s194
      %p203 = scmp.eq.s32.totalorder %s35, 1
      %p204 = por %p202, %p203
      %p205 = scmp.ne.s32.totalorder %s194, %s195
      %p206 = scmp.eq.s32.totalorder %s35, 0
      %p207 = por %p205, %p206
      %p208 = scmp.ne.s32.totalorder %s194, %s195
      %p209 = scmp.eq.s32.totalorder %s36, 1
      %p210 = por %p208, %p209
      %p212 = scmp.ne.s32.totalorder %s195, %s211
      %p213 = scmp.eq.s32.totalorder %s36, 0
      %p214 = por %p212, %p213
      %s215 = ssub.s32 %s30, %s37
      %p216 = scmp.eq.s32.totalorder %s215, 0
      %s218 = sadd.s32 %s217, 1
      %s219 = scalar_select %p216, %s217, %s218
      %p222 = pneg %p216
      %p223 = scmp.eq.s32.totalorder %s30, 1
      %p224 = por %p222, %p223
      %p225 = scmp.ne.s32.totalorder %s217, %s220
      %p226 = scmp.eq.s32.totalorder %s30, 0
      %p227 = por %p225, %p226
      %p228 = scmp.ne.s32.totalorder %s217, %s220
      %p229 = scmp.eq.s32.totalorder %s35, 1
      %p230 = por %p228, %p229
      %p231 = scmp.ne.s32.totalorder %s220, %s221
      %p232 = scmp.eq.s32.totalorder %s35, 0
      %p233 = por %p231, %p232
      %p234 = scmp.ne.s32.totalorder %s220, %s221
      %p235 = scmp.eq.s32.totalorder %s36, 1
      %p236 = por %p234, %p235
      %p238 = scmp.ne.s32.totalorder %s221, %s237
      %p239 = scmp.eq.s32.totalorder %s36, 0
      %p240 = por %p238, %p239
      %s241 = ssub.s32 %s30, %s37
      %p242 = scmp.eq.s32.totalorder %s241, 0
      %s244 = sadd.s32 %s243, 1
      %s245 = scalar_select %p242, %s243, %s244
      %p248 = pneg %p242
      %p249 = scmp.eq.s32.totalorder %s30, 1
      %p250 = por %p248, %p249
      %p251 = scmp.ne.s32.totalorder %s243, %s246
      %p252 = scmp.eq.s32.totalorder %s30, 0
      %p253 = por %p251, %p252
      %p254 = scmp.ne.s32.totalorder %s243, %s246
      %p255 = scmp.eq.s32.totalorder %s35, 1
      %p256 = por %p254, %p255
      %p257 = scmp.ne.s32.totalorder %s246, %s247
      %p258 = scmp.eq.s32.totalorder %s35, 0
      %p259 = por %p257, %p258
      %p260 = scmp.ne.s32.totalorder %s246, %s247
      %p261 = scmp.eq.s32.totalorder %s36, 1
      %p262 = por %p260, %p261
      %p264 = scmp.ne.s32.totalorder %s247, %s263
      %p265 = scmp.eq.s32.totalorder %s36, 0
      %p266 = por %p264, %p265
      %p267 = scmp.le.s32.totalorder 1, %s30
      %p268 = scmp.lt.s32.totalorder %s30, 3
      %p269 = pnand %p267, %p268
      %p270 = pneg %p269
      // Predicated region
      $region9: #{tpu_custom_call.1} parent=5 // pred_check
        _
      $region10: #{tpu_custom_call.1} parent=5 // pred_check_branch
        %272 = sbr.rel (%p269) target = $region12
      $region11: #{tpu_custom_call.1} parent=5 // pred_region
        %s273 = ssub.s32 %s30, 1
        // Predicated region
        $region13: #{tpu_custom_call.1} parent=11 // pred_check
          %p274 = pneg %p51
        $region14: #{tpu_custom_call.1} parent=11 // pred_check_branch
          %276 = sbr.rel (%p274) target = $region16
        $region15: #{tpu_custom_call.1} parent=11 // pred_region
          _
        $region16: #{tpu_custom_call.1} parent=11 // pred_fallthru
          _
      $region12: #{tpu_custom_call.1} parent=5 // pred_fallthru
        _
      %p277 = scmp.lt.s32.totalorder %s30, 2
      // Predicated region
      $region17: #{tpu_custom_call.1} parent=5 // pred_check
        %p278 = pneg %p277
      $region18: #{tpu_custom_call.1} parent=5 // pred_check_branch
        %280 = sbr.rel (%p278) target = $region20
      $region19: #{tpu_custom_call.1} parent=5 // pred_region
        // Predicated region
        $region21: #{tpu_custom_call.1} parent=19 // pred_check
          %p281 = pneg %p71
        $region22: #{tpu_custom_call.1} parent=19 // pred_check_branch
          %283 = sbr.rel (%p281) target = $region24
        $region23: #{tpu_custom_call.1} parent=19 // pred_region
          %s284 = sand.u32 %s61, 1
          %s285 = scalar_lea.sflag [#allocation3], %s284
          %s286 = sand.u32 %s61, 1
          %s287 = smul.addr %s286, 16
          %s288 = scalar_lea.vmem [#allocation2], %s287
          %s289 = smul.u32 2, %s30
          %s291 = ssub.s32 256, 256
          %292 = vsyncadd %s285, %s291
          %s293 = smul.addr %s289, 128
          %s294 = scalar_lea.hbm %s1, %s293
          %s296 = sshll.u32 %s288, 4
          %s297 = int_to_ptr.vmem [resolvable:$true] %s296
          %299 = dma.hbm_to_vmem [thread:$0]  %s294, 256, %s297, %s285
        $region24: #{tpu_custom_call.1} parent=19 // pred_fallthru
          _
        // Predicated region
        $region25: #{tpu_custom_call.1} parent=19 // pred_check
          %p300 = pneg %p97
        $region26: #{tpu_custom_call.1} parent=19 // pred_check_branch
          %302 = sbr.rel (%p300) target = $region28
        $region27: #{tpu_custom_call.1} parent=19 // pred_region
          %s303 = sand.u32 %s30, 1
          %s304 = scalar_lea.sflag [#allocation6], %s303
          %s305 = sand.u32 %s87, 1
          %s306 = smul.addr %s305, 8
          %s307 = scalar_lea.vmem [#allocation5], %s306
          %s308 = smul.u32 2, %s30
          %s310 = ssub.s32 128, 128
          %311 = vsyncadd %s304, %s310
          %s312 = smul.addr %s308, 64
          %s313 = scalar_lea.hbm %s2, %s312
          %s315 = sshll.u32 %s307, 4
          %s316 = int_to_ptr.vmem [resolvable:$true] %s315
          %318 = dma.hbm_to_vmem [thread:$0]  %s313, 128, %s316, %s304
        $region28: #{tpu_custom_call.1} parent=19 // pred_fallthru
          _
        // Predicated region
        $region29: #{tpu_custom_call.1} parent=19 // pred_check
          %p319 = pneg %p123
        $region30: #{tpu_custom_call.1} parent=19 // pred_check_branch
          %321 = sbr.rel (%p319) target = $region32
        $region31: #{tpu_custom_call.1} parent=19 // pred_region
          %s322 = sand.u32 %s30, 1
          %s323 = scalar_lea.sflag [#allocation6], %s322
          %s324 = sand.u32 %s113, 1
          %s325 = smul.addr %s324, 64
          %s326 = scalar_lea.vmem [#allocation7], %s325
          %s327 = smul.u32 2, %s30
          %s329 = ssub.s32 1024, 1024
          %330 = vsyncadd %s323, %s329
          %s331 = smul.addr %s327, 128
          %s332 = scalar_lea.hbm %s3, %s331
          %s333 = sshll.u32 %s326, 4
          %s334 = int_to_ptr.vmem [resolvable:$true] %s333
          %339 = dma.hbm_to_vmem [thread:$0]  %s332, 1024, %s334, %s323, 512, 256, 16
        $region32: #{tpu_custom_call.1} parent=19 // pred_fallthru
          _
      $region20: #{tpu_custom_call.1} parent=5 // pred_fallthru
        _
      %p340 = scmp.le.s32.totalorder 1, %s30
      %p341 = scmp.lt.s32.totalorder %s30, 3
      %p342 = pnand %p340, %p341
      %p343 = pneg %p342
      // Predicated region
      $region33: #{tpu_custom_call.1} parent=5 // pred_check
        _
      $region34: #{tpu_custom_call.1} parent=5 // pred_check_branch
        %345 = sbr.rel (%p342) target = $region36
      $region35: #{tpu_custom_call.1} parent=5 // pred_region
        %s346 = ssub.s32 %s30, 1
        %s347 = sand.u32 %s64, 1
        %s348 = scalar_lea.sflag [#allocation3], %s347
        %s349 = sand.u32 %s64, 1
        %s350 = smul.addr %s349, 16
        %s351 = scalar_lea.vmem [#allocation2], %s350
        // Predicated region
        $region37: #{tpu_custom_call.1} parent=35 // pred_check
          %p352 = pneg %p77
        $region38: #{tpu_custom_call.1} parent=35 // pred_check_branch
          %354 = sbr.rel (%p352) target = $region40
        $region39: #{tpu_custom_call.1} parent=35 // pred_region
          %355 = dma.done %s348, 256
        $region40: #{tpu_custom_call.1} parent=35 // pred_fallthru
          _
        %s356 = sand.u32 %s35, 1
        %s357 = scalar_lea.sflag [#allocation6], %s356
        %s358 = sand.u32 %s90, 1
        %s359 = smul.addr %s358, 8
        %s360 = scalar_lea.vmem [#allocation5], %s359
        // Predicated region
        $region41: #{tpu_custom_call.1} parent=35 // pred_check
          %p361 = pneg %p103
        $region42: #{tpu_custom_call.1} parent=35 // pred_check_branch
          %363 = sbr.rel (%p361) target = $region44
        $region43: #{tpu_custom_call.1} parent=35 // pred_region
          %364 = dma.done %s357, 128
        $region44: #{tpu_custom_call.1} parent=35 // pred_fallthru
          _
        %s365 = sand.u32 %s35, 1
        %s366 = scalar_lea.sflag [#allocation6], %s365
        %s367 = sand.u32 %s116, 1
        %s368 = smul.addr %s367, 64
        %s369 = scalar_lea.vmem [#allocation7], %s368
        // Predicated region
        $region45: #{tpu_custom_call.1} parent=35 // pred_check
          %p370 = pneg %p129
        $region46: #{tpu_custom_call.1} parent=35 // pred_check_branch
          %372 = sbr.rel (%p370) target = $region48
        $region47: #{tpu_custom_call.1} parent=35 // pred_region
          %373 = dma.done %s366, 1024
        $region48: #{tpu_custom_call.1} parent=35 // pred_fallthru
          _
        %p374 = pneg %p51
        %p375 = pneg %p48
        %s376 = sand.u32 %s64, 1
        %s377 = scalar_lea.sflag [#allocation3], %s376
        %s378 = sand.u32 %s64, 1
        %s379 = smul.addr %s378, 16
        %s380 = scalar_lea.vmem [#allocation2], %s379
        %p381 = pneg %p77
        %p382 = pneg %p74
        %s383 = sand.u32 %s35, 1
        %s384 = scalar_lea.sflag [#allocation6], %s383
        %s385 = sand.u32 %s90, 1
        %s386 = smul.addr %s385, 8
        %s387 = scalar_lea.vmem [#allocation5], %s386
        %p388 = pneg %p103
        %p389 = pneg %p100
        %s390 = sand.u32 %s35, 1
        %s391 = scalar_lea.sflag [#allocation6], %s390
        %s392 = sand.u32 %s116, 1
        %s393 = smul.addr %s392, 64
        %s394 = scalar_lea.vmem [#allocation7], %s393
        %p395 = pneg %p129
        %p396 = pneg %p126
        %p397 = pneg %p155
        %p398 = pneg %p152
        %s399 = sand.u32 %s142, 1
        %s400 = scalar_lea.sflag [#allocation4], %s399
        %s401 = sand.u32 %s142, 1
        %s402 = smul.addr %s401, 2
        %s403 = scalar_lea.vmem [#allocation8], %s402
        %p404 = pneg %p181
        %p405 = pneg %p178
        %s406 = sand.u32 %s35, 1
        %s407 = scalar_lea.sflag [#allocation10], %s406
        %s408 = sand.u32 %s168, 1
        %s409 = smul.addr %s408, 8
        %s410 = scalar_lea.vmem [#allocation9], %s409
        %p411 = pneg %p207
        %p412 = pneg %p204
        %s413 = sand.u32 %s35, 1
        %s414 = scalar_lea.sflag [#allocation10], %s413
        %s415 = sand.u32 %s194, 1
        %s416 = smul.addr %s415, 8
        %s417 = scalar_lea.vmem [#allocation11], %s416
        %p418 = pneg %p233
        %p419 = pneg %p230
        %s420 = sand.u32 %s35, 1
        %s421 = scalar_lea.sflag [#allocation13], %s420
        %s422 = sand.u32 %s220, 1
        %s423 = smul.addr %s422, 8
        %s424 = scalar_lea.vmem [#allocation12], %s423
        %p425 = pneg %p259
        %p426 = pneg %p256
        %s427 = sand.u32 %s35, 1
        %s428 = scalar_lea.sflag [#allocation13], %s427
        %s429 = sand.u32 %s246, 1
        %s430 = smul.addr %s429, 64
        %s431 = scalar_lea.vmem [#allocation14], %s430
        %s432 = smul.u32 2, %s35
        %s433 = smul.u32 2, %s35
        %s434 = smul.u32 2, %s35
        %s435 = smul.u32 2, %s35
        %s436 = smul.u32 2, %s35
        %s437 = smul.u32 2, %s35
        %s438 = smul.u32 2, %s35
        %s439 = smul.u32 2, %s35
        %v440 = vld [vmem:[%s351] sm:$0x1f]
        %v441 = vld [vmem:[%s351 + $0x8] sm:$0x1f]
        %v442 = vld [vmem:[%s0] sm:$0x1f]
        %444 = vset.pattern.permute.xlu0 0
        %445 = vperm.xlu0 %444, %v442
        %v446 = vpop.permute.xlu0 %445
        %v448 = vadd.f32 %v440, %v446
        %v449 = vadd.f32 %v441, %v446
        %v452 = vrot.slane %v448, 7
        %v453 = vrot.slane %v449, 7
        %vm456 = vcmp.gt.f32.partialorder %v448, %v452
        %vm457 = vcmp.gt.f32.partialorder %v449, %v453
        %v458 = vsel %vm456, %v448, %v452
        %v459 = vsel %vm457, %v449, %v453
        %v460 = vsel %vm456, 1, 0
        %v461 = vsel %vm457, 1, 0
        %v464 = vrot.slane %v458, 7
        %v465 = vrot.slane %v459, 7
        %vm468 = vcmp.gt.f32.partialorder %v448, %v464
        %vm469 = vcmp.gt.f32.partialorder %v449, %v465
        %v470 = vsel %vm468, %v448, %v464
        %v471 = vsel %vm469, %v449, %v465
        %v472 = vrot.slane %v460, 7
        %v473 = vrot.slane %v461, 7
        %v474 = vsel %vm468, 2, %v472
        %v475 = vsel %vm469, 2, %v473
        %v478 = vrot.slane %v470, 7
        %v479 = vrot.slane %v471, 7
        %vm482 = vcmp.gt.f32.partialorder %v448, %v478
        %vm483 = vcmp.gt.f32.partialorder %v449, %v479
        %v484 = vsel %vm482, %v448, %v478
        %v485 = vsel %vm483, %v449, %v479
        %v486 = vrot.slane %v474, 7
        %v487 = vrot.slane %v475, 7
        %v488 = vsel %vm482, 3, %v486
        %v489 = vsel %vm483, 3, %v487
        %v492 = vrot.slane %v484, 7
        %v493 = vrot.slane %v485, 7
        %vm496 = vcmp.gt.f32.partialorder %v448, %v492
        %vm497 = vcmp.gt.f32.partialorder %v449, %v493
        %v498 = vrot.slane %v488, 7
        %v499 = vrot.slane %v489, 7
        %v500 = vsel %vm496, 4, %v498
        %v501 = vsel %vm497, 4, %v499
        %v502 = vcombine.high %v500, %v501
        %v504 = vunpack.c.l.s4 1966171168
        %v505 = vunpack.c.0.s8 %v504
        %v506 = vlaneseq
        %v507 = vshrl.u32 %v506, 7
        %v508 = vsub.s32 %v505, %v507
        %v509 = vrot.slane %v502, %v508
        %v511 = vunpack.c.l.s4 1966171168
        %v512 = vunpack.c.0.s8 %v511
        %v513 = vlaneseq
        %v514 = vshrl.u32 %v513, 7
        %v515 = vsub.s32 %v512, %v514
        %v516 = vrot.slane %v509, %v515
        %v517 = vlaneseq
        %vm518 = vcmp.ge.s32.totalorder %v517, 0
        %vm519 = vcmp.lt.s32.totalorder %v517, 256
        %vm520 = vmand %vm518, %vm519
        %521 = vst.msk [vmem:[%s403] sm:$0x3] %vm520, %v516
        %v522 = vlaneseq
        %v523 = vshrl.u32 %v522, 7
        %v524 = vlaneseq
        %v525 = vshrl.u32 %v524, 7
        %v526 = vsub.s32 4, %v525
        %v527 = vrot.slane %v500, %v526
        %v528 = vlaneseq
        %v529 = vshrl.u32 %v528, 7
        %v530 = vsub.s32 4, %v529
        %v531 = vrot.slane %v501, %v530
        %vm532 = vcmp.lt.s32.totalorder %v523, %v527
        %vm533 = vcmp.lt.s32.totalorder %v523, %v531
        %v534 = vsel %vm532, 1, 0
        %v535 = vsel %vm533, 1, 0
        %v536 = vcvt.s32.f32 %v534
        %v537 = vcvt.s32.f32 %v535
        %v538 = vld [vmem:[%s360] sm:$0xff]
        %v541 = vcombine.low %v536, %v537
        %v543 = vmul.f32 %v538, %v541
        %vm544 = vcmp.gt.f32.partialorder %v543, 0.5
        %v545 = vsel %vm544, 1, 0
        %v546 = vcvt.s32.f32 %v545
        %v547 = vmul.f32 %v546, %v541
        %548 = vst [vmem:[%s410] sm:$0xff] %v543
        %549 = vst [vmem:[%s417] sm:$0xff] %v547
        %v551 = vcombine.high %v547, %v547
        %v553 = vsub.f32 %v536, %v547
        %v554 = vsub.f32 %v537, %v551
        %v557 = vcombine.low %v553, %v554
        %559 = vst [vmem:[%s424] sm:$0xff] %v557
        %v560 = vld [vmem:[%s369] sm:$0xff]
        %v561 = vld [vmem:[%s369 + $0x8] sm:$0xff]
        %v562 = vld [vmem:[%s369 + $0x10] sm:$0xff]
        %v563 = vld [vmem:[%s369 + $0x18] sm:$0xff]
        %v564 = vld [vmem:[%s369 + $0x20] sm:$0xff]
        %v565 = vld [vmem:[%s369 + $0x28] sm:$0xff]
        %v566 = vld [vmem:[%s369 + $0x30] sm:$0xff]
        %v567 = vld [vmem:[%s369 + $0x38] sm:$0xff]
        %v569 = vunpack.c.l.s4 1966171168
        %v570 = vunpack.c.0.s8 %v569
        %v571 = vlaneseq
        %v572 = vshrl.u32 %v571, 7
        %v573 = vsub.s32 %v570, %v572
        %v574 = vrot.slane %v547, %v573
        %v575 = vcombine.high %v574, %v574
        %v577 = vunpack.c.l.s4 1966171168
        %v578 = vunpack.c.0.s8 %v577
        %v579 = vlaneseq
        %v580 = vshrl.u32 %v579, 7
        %v581 = vsub.s32 %v578, %v580
        %v582 = vrot.slane %v574, %v581
        %v584 = vunpack.c.l.s4 1966171168
        %v585 = vunpack.c.0.s8 %v584
        %v586 = vlaneseq
        %v587 = vshrl.u32 %v586, 7
        %v588 = vsub.s32 %v585, %v587
        %v589 = vrot.slane %v575, %v588
        %v590 = vcombine.high %v582, %v582
        %v591 = vcombine.high %v589, %v589
        %v592 = vlaneseq
        %v593 = vshrl.u32 %v592, 7
        %v594 = vsub.s32 0, %v593
        %v595 = vrot.slane %v582, %v594
        %v596 = vlaneseq
        %v597 = vshrl.u32 %v596, 7
        %v598 = vsub.s32 1, %v597
        %v599 = vrot.slane %v582, %v598
        %v600 = vlaneseq
        %v601 = vshrl.u32 %v600, 7
        %v602 = vsub.s32 0, %v601
        %v603 = vrot.slane %v589, %v602
        %v604 = vlaneseq
        %v605 = vshrl.u32 %v604, 7
        %v606 = vsub.s32 1, %v605
        %v607 = vrot.slane %v589, %v606
        %v608 = vlaneseq
        %v609 = vshrl.u32 %v608, 7
        %v610 = vsub.s32 0, %v609
        %v611 = vrot.slane %v590, %v610
        %v612 = vlaneseq
        %v613 = vshrl.u32 %v612, 7
        %v614 = vsub.s32 1, %v613
        %v615 = vrot.slane %v590, %v614
        %v616 = vlaneseq
        %v617 = vshrl.u32 %v616, 7
        %v618 = vsub.s32 0, %v617
        %v619 = vrot.slane %v591, %v618
        %v620 = vlaneseq
        %v621 = vshrl.u32 %v620, 7
        %v622 = vsub.s32 1, %v621
        %v623 = vrot.slane %v591, %v622
        %v632 = vmul.f32 %v560, %v595
        %v633 = vmul.f32 %v561, %v599
        %v634 = vmul.f32 %v562, %v603
        %v635 = vmul.f32 %v563, %v607
        %v636 = vmul.f32 %v564, %v611
        %v637 = vmul.f32 %v565, %v615
        %v638 = vmul.f32 %v566, %v619
        %v639 = vmul.f32 %v567, %v623
        %640 = vst [vmem:[%s431] sm:$0xff] %v632
        %641 = vst [vmem:[%s431 + $0x8] sm:$0xff] %v633
        %642 = vst [vmem:[%s431 + $0x10] sm:$0xff] %v634
        %643 = vst [vmem:[%s431 + $0x18] sm:$0xff] %v635
        %644 = vst [vmem:[%s431 + $0x20] sm:$0xff] %v636
        %645 = vst [vmem:[%s431 + $0x28] sm:$0xff] %v637
        %646 = vst [vmem:[%s431 + $0x30] sm:$0xff] %v638
        %647 = vst [vmem:[%s431 + $0x38] sm:$0xff] %v639
        %s648 = sand.u32 %s142, 1
        %s649 = scalar_lea.sflag [#allocation4], %s648
        %s650 = sand.u32 %s142, 1
        %s651 = smul.addr %s650, 2
        %s652 = scalar_lea.vmem [#allocation8], %s651
        %s653 = sand.u32 %s35, 1
        %s654 = scalar_lea.sflag [#allocation10], %s653
        %s655 = sand.u32 %s168, 1
        %s656 = smul.addr %s655, 8
        %s657 = scalar_lea.vmem [#allocation9], %s656
        %s658 = sand.u32 %s35, 1
        %s659 = scalar_lea.sflag [#allocation10], %s658
        %s660 = sand.u32 %s194, 1
        %s661 = smul.addr %s660, 8
        %s662 = scalar_lea.vmem [#allocation11], %s661
        %s663 = sand.u32 %s35, 1
        %s664 = scalar_lea.sflag [#allocation13], %s663
        %s665 = sand.u32 %s220, 1
        %s666 = smul.addr %s665, 8
        %s667 = scalar_lea.vmem [#allocation12], %s666
        %s668 = sand.u32 %s35, 1
        %s669 = scalar_lea.sflag [#allocation13], %s668
        %s670 = sand.u32 %s246, 1
        %s671 = smul.addr %s670, 64
        %s672 = scalar_lea.vmem [#allocation14], %s671
        // Predicated region
        $region49: #{tpu_custom_call.1} parent=35 // pred_check
          %p673 = pneg %p152
        $region50: #{tpu_custom_call.1} parent=35 // pred_check_branch
          %675 = sbr.rel (%p673) target = $region52
        $region51: #{tpu_custom_call.1} parent=35 // pred_region
          %s676 = smul.u32 2, %s35
          %s678 = ssub.s32 32, 32
          %679 = vsyncadd %s649, %s678
          %s680 = smul.addr %s676, 16
          %s681 = scalar_lea.hbm %s4, %s680
          %s683 = sshll.u32 %s652, 4
          %s684 = int_to_ptr.vmem [resolvable:$true] %s683
          %686 = dma.vmem_to_hbm [thread:$0]  %s684, 32, %s681, %s649
        $region52: #{tpu_custom_call.1} parent=35 // pred_fallthru
          _
        // Predicated region
        $region53: #{tpu_custom_call.1} parent=35 // pred_check
          %p687 = pneg %p178
        $region54: #{tpu_custom_call.1} parent=35 // pred_check_branch
          %689 = sbr.rel (%p687) target = $region56
        $region55: #{tpu_custom_call.1} parent=35 // pred_region
          %s690 = smul.u32 2, %s35
          %s692 = ssub.s32 128, 128
          %693 = vsyncadd %s654, %s692
          %s694 = smul.addr %s690, 64
          %s695 = scalar_lea.hbm %s5, %s694
          %s697 = sshll.u32 %s657, 4
          %s698 = int_to_ptr.vmem [resolvable:$true] %s697
          %700 = dma.vmem_to_hbm [thread:$0]  %s698, 128, %s695, %s654
        $region56: #{tpu_custom_call.1} parent=35 // pred_fallthru
          _
        // Predicated region
        $region57: #{tpu_custom_call.1} parent=35 // pred_check
          %p701 = pneg %p204
        $region58: #{tpu_custom_call.1} parent=35 // pred_check_branch
          %703 = sbr.rel (%p701) target = $region60
        $region59: #{tpu_custom_call.1} parent=35 // pred_region
          %s704 = smul.u32 2, %s35
          %s706 = ssub.s32 128, 128
          %707 = vsyncadd %s659, %s706
          %s708 = smul.addr %s704, 64
          %s709 = scalar_lea.hbm %s6, %s708
          %s711 = sshll.u32 %s662, 4
          %s712 = int_to_ptr.vmem [resolvable:$true] %s711
          %714 = dma.vmem_to_hbm [thread:$0]  %s712, 128, %s709, %s659
        $region60: #{tpu_custom_call.1} parent=35 // pred_fallthru
          _
        // Predicated region
        $region61: #{tpu_custom_call.1} parent=35 // pred_check
          %p715 = pneg %p230
        $region62: #{tpu_custom_call.1} parent=35 // pred_check_branch
          %717 = sbr.rel (%p715) target = $region64
        $region63: #{tpu_custom_call.1} parent=35 // pred_region
          %s718 = smul.u32 2, %s35
          %s720 = ssub.s32 128, 128
          %721 = vsyncadd %s664, %s720
          %s722 = smul.addr %s718, 64
          %s723 = scalar_lea.hbm %s7, %s722
          %s725 = sshll.u32 %s667, 4
          %s726 = int_to_ptr.vmem [resolvable:$true] %s725
          %728 = dma.vmem_to_hbm [thread:$0]  %s726, 128, %s723, %s664
        $region64: #{tpu_custom_call.1} parent=35 // pred_fallthru
          _
        // Predicated region
        $region65: #{tpu_custom_call.1} parent=35 // pred_check
          %p729 = pneg %p256
        $region66: #{tpu_custom_call.1} parent=35 // pred_check_branch
          %731 = sbr.rel (%p729) target = $region68
        $region67: #{tpu_custom_call.1} parent=35 // pred_region
          %s732 = smul.u32 2, %s35
          %s734 = ssub.s32 1024, 1024
          %735 = vsyncadd %s669, %s734
          %s736 = smul.addr %s732, 128
          %s737 = scalar_lea.hbm %s8, %s736
          %s738 = sshll.u32 %s672, 4
          %s739 = int_to_ptr.vmem [resolvable:$true] %s738
          %744 = dma.vmem_to_hbm [thread:$0]  %s739, 1024, %s737, %s669, 256, 512, 16
        $region68: #{tpu_custom_call.1} parent=35 // pred_fallthru
          _
      $region36: #{tpu_custom_call.1} parent=5 // pred_fallthru
        _
      %p745 = scmp.le.s32.totalorder 2, %s30
      // Predicated region
      $region69: #{tpu_custom_call.1} parent=5 // pred_check
        %p746 = pneg %p745
      $region70: #{tpu_custom_call.1} parent=5 // pred_check_branch
        %748 = sbr.rel (%p746) target = $region72
      $region71: #{tpu_custom_call.1} parent=5 // pred_region
        %s749 = ssub.s32 %s30, 2
        // Predicated region
        $region73: #{tpu_custom_call.1} parent=71 // pred_check
          %p750 = pneg %p158
        $region74: #{tpu_custom_call.1} parent=71 // pred_check_branch
          %752 = sbr.rel (%p750) target = $region76
        $region75: #{tpu_custom_call.1} parent=71 // pred_region
          %s753 = sand.u32 %s143, 1
          %s754 = scalar_lea.sflag [#allocation4], %s753
          %s755 = sand.u32 %s143, 1
          %s756 = smul.addr %s755, 2
          %s757 = scalar_lea.vmem [#allocation8], %s756
          %758 = dma.done %s754, 32
        $region76: #{tpu_custom_call.1} parent=71 // pred_fallthru
          _
        // Predicated region
        $region77: #{tpu_custom_call.1} parent=71 // pred_check
          %p759 = pneg %p184
        $region78: #{tpu_custom_call.1} parent=71 // pred_check_branch
          %761 = sbr.rel (%p759) target = $region80
        $region79: #{tpu_custom_call.1} parent=71 // pred_region
          %s762 = sand.u32 %s36, 1
          %s763 = scalar_lea.sflag [#allocation10], %s762
          %s764 = sand.u32 %s169, 1
          %s765 = smul.addr %s764, 8
          %s766 = scalar_lea.vmem [#allocation9], %s765
          %767 = dma.done %s763, 128
        $region80: #{tpu_custom_call.1} parent=71 // pred_fallthru
          _
        // Predicated region
        $region81: #{tpu_custom_call.1} parent=71 // pred_check
          %p768 = pneg %p210
        $region82: #{tpu_custom_call.1} parent=71 // pred_check_branch
          %770 = sbr.rel (%p768) target = $region84
        $region83: #{tpu_custom_call.1} parent=71 // pred_region
          %s771 = sand.u32 %s36, 1
          %s772 = scalar_lea.sflag [#allocation10], %s771
          %s773 = sand.u32 %s195, 1
          %s774 = smul.addr %s773, 8
          %s775 = scalar_lea.vmem [#allocation11], %s774
          %776 = dma.done %s772, 128
        $region84: #{tpu_custom_call.1} parent=71 // pred_fallthru
          _
        // Predicated region
        $region85: #{tpu_custom_call.1} parent=71 // pred_check
          %p777 = pneg %p236
        $region86: #{tpu_custom_call.1} parent=71 // pred_check_branch
          %779 = sbr.rel (%p777) target = $region88
        $region87: #{tpu_custom_call.1} parent=71 // pred_region
          %s780 = sand.u32 %s36, 1
          %s781 = scalar_lea.sflag [#allocation13], %s780
          %s782 = sand.u32 %s221, 1
          %s783 = smul.addr %s782, 8
          %s784 = scalar_lea.vmem [#allocation12], %s783
          %785 = dma.done %s781, 128
        $region88: #{tpu_custom_call.1} parent=71 // pred_fallthru
          _
        // Predicated region
        $region89: #{tpu_custom_call.1} parent=71 // pred_check
          %p786 = pneg %p262
        $region90: #{tpu_custom_call.1} parent=71 // pred_check_branch
          %788 = sbr.rel (%p786) target = $region92
        $region91: #{tpu_custom_call.1} parent=71 // pred_region
          %s789 = sand.u32 %s36, 1
          %s790 = scalar_lea.sflag [#allocation13], %s789
          %s791 = sand.u32 %s247, 1
          %s792 = smul.addr %s791, 64
          %s793 = scalar_lea.vmem [#allocation14], %s792
          %794 = dma.done %s790, 1024
        $region92: #{tpu_custom_call.1} parent=71 // pred_fallthru
          _
      $region72: #{tpu_custom_call.1} parent=5 // pred_fallthru
        _
    $region6: #{tpu_custom_call.1} parent=1 // loop_footer
      %s34 = sadd.s32 1, %s30
    $region7: #{tpu_custom_call.1} parent=1 // loop_footer_branch
      %29 = sbr.rel target = $region3
    $region8: #{tpu_custom_call.1} parent=1 // loop_exit
      _
    %795 = vsyncpa [#allocation3], 1
    %s796 = scalar_lea.sflag [#allocation3], 1
    %797 = vsyncpa %s796, 1
    %798 = vsyncpa [#allocation6], 1
    %s799 = scalar_lea.sflag [#allocation6], 1
    %800 = vsyncpa %s799, 1
    %801 = vsyncpa [#allocation4], 1
    %s802 = scalar_lea.sflag [#allocation4], 1
    %803 = vsyncpa %s802, 1
    %804 = vsyncpa [#allocation10], 1
    %s805 = scalar_lea.sflag [#allocation10], 1
    %806 = vsyncpa %s805, 1
    %807 = vsyncpa [#allocation13], 1
    %s808 = scalar_lea.sflag [#allocation13], 1
    %809 = vsyncpa %s808, 1

</llo_original>
